<compile_context>
chip_gen: v7x
topology: tpu7x:2x2x1
jax: 0.10.0
libtpu: 0.0.40
codegen_flags: <defaults>
</compile_context>

<pallas_src>
import math
from typing import Dict, List, Union

import jax
import jax.numpy as jnp
from jax.experimental import pallas as pl
from jax.experimental.pallas import tpu as pltpu


def _round_up(x: int, m: int) -> int:
    return (x + m - 1) // m * m


# ----------------------------------------------------------------------------
# Generation-aware VMEM budget (v7x: 64 MiB physical, v5e/v6e: 128 MiB).
# ----------------------------------------------------------------------------
def _vmem_cap_bytes() -> int:
    try:
        phys = int(pltpu.get_tpu_info().vmem_capacity_bytes)
    except Exception:
        phys = 64 << 20                      # unknown -> assume the smallest (v7x)
    if phys <= (64 << 20):
        return 52 << 20                      # headroom for one-hot temps / internal scratch
    return 108 << 20


# ----------------------------------------------------------------------------
# One-time probe: does this jax build accept pipeline_mode=pl.Buffered(1)
# (single-buffered, i.e. no double-buffering of the VMEM-resident table)?
# ----------------------------------------------------------------------------
_SINGLE_BUF_OK = None


def _single_buffer_supported() -> bool:
    global _SINGLE_BUF_OK
    if _SINGLE_BUF_OK is not None:
        return _SINGLE_BUF_OK

    def _copy(x_ref, o_ref):
        o_ref[...] = x_ref[...]

    try:
        x = jnp.zeros((8, 128), jnp.float32)
        out = pl.pallas_call(
            _copy,
            out_shape=jax.ShapeDtypeStruct((8, 128), jnp.float32),
            grid_spec=pltpu.PrefetchScalarGridSpec(
                num_scalar_prefetch=0,
                grid=(1,),
                in_specs=[pl.BlockSpec((8, 128), lambda i: (0, 0),
                                       pipeline_mode=pl.Buffered(1))],
                out_specs=pl.BlockSpec((8, 128), lambda i: (0, 0)),
            ),
        )(x)
        jax.block_until_ready(out)
        _SINGLE_BUF_OK = True
    except Exception:
        _SINGLE_BUF_OK = False
    return _SINGLE_BUF_OK


def _table_spec(block_shape, index_map) -> pl.BlockSpec:
    """BlockSpec for grid-resident operands: single-buffered when supported."""
    if _single_buffer_supported():
        return pl.BlockSpec(block_shape, index_map, pipeline_mode=pl.Buffered(1))
    return pl.BlockSpec(block_shape, index_map)


def _table_buffer_count() -> int:
    return 1 if _single_buffer_supported() else 2


def _pick_tb(batch: int) -> int:
    # TB=256 fills the 2x256x256 MXU M dim on v6e/v7x and halves per-step
    # pipeline overhead.  TODO(synk): keep TB=128 on v5e (4x128x128 MXU) once a
    # reliable generation query distinguishes v5e from v6e.
    if batch >= 256:
        return 256
    return min(128, _round_up(max(batch, 1), 8))


# ----------------------------------------------------------------------------
# Kernels
# ----------------------------------------------------------------------------
def _onehot_gather_kernel(ids_ref, iota_ref, w_ref, out_ref):
    # ids_ref:  (TB, 1)  int32   -- this step's ids
    # iota_ref: (1, Vp)  int32   -- grid-invariant, loaded once (Buffered(1))
    # w_ref:    (Vp, Dp) f32     -- whole table, VMEM resident (Buffered(1))
    # out_ref:  (TB, Dp) f32
    onehot = (iota_ref[...] == ids_ref[...]).astype(w_ref.dtype)        # (TB, Vp)
    out_ref[...] = jnp.dot(onehot, w_ref[...],
                           preferred_element_type=jnp.float32).astype(out_ref.dtype)


def _onehot_gather_kernel_multi(ids_ref, iota_ref, w_ref, out_ref):
    # ids_ref:  (1, TB, 1) int32; iota_ref: (1, Vp) int32
    # w_ref:    (1, Vp, Dmax) f32 (one table); out_ref: (1, TB, Dmax) f32
    ids = ids_ref[0]                                                     # (TB, 1)
    onehot = (iota_ref[...] == ids).astype(w_ref.dtype)                  # (TB, Vp)
    out_ref[0] = jnp.dot(onehot, w_ref[0],
                         preferred_element_type=jnp.float32).astype(out_ref.dtype)


def _row_copy_kernel(ids_smem_ref, row_ref, out_ref):
    # Large-table fallback: the row was already selected by the Element index_map.
    del ids_smem_ref
    out_ref[...] = row_ref[...]


# ----------------------------------------------------------------------------
# Single-table gather (list-mode and per-table fallback)
# ----------------------------------------------------------------------------
def embedding_gather(weight_padded: jax.Array, iota_row: jax.Array,
                     ids: jax.Array, *, force_rowdma: bool = False) -> jax.Array:
    """weight_padded: (Vp, Dp) f32 with Vp % 128 == 0, Dp % 128 == 0.
    iota_row: (1, Vp) int32.  ids: (B,) int32.  Returns (B, Dp) f32."""
    Vp, Dp = map(int, weight_padded.shape)
    B = int(ids.shape[0])
    ids = ids.astype(jnp.int32)
    cap = _vmem_cap_bytes()

    TB = _pick_tb(B)
    num_tiles = -(-B // TB)
    Bp = num_tiles * TB

    table_bytes = _table_buffer_count() * Vp * Dp * 4
    # double-buffered ids/out tiles + (TB, Vp) one-hot f32 temporaries + iota row
    tile_bytes = 2 * (TB * Dp * 4 + TB * 4) + 2 * TB * Vp * 4 + Vp * 4
    needed = table_bytes + tile_bytes + (4 << 20)

    if force_rowdma or needed > cap:
        # ---- Large-table fallback: per-row DMA gather (no table ceiling) ----
        out = pl.pallas_call(
            _row_copy_kernel,
            out_shape=jax.ShapeDtypeStruct((B, Dp), weight_padded.dtype),
            grid_spec=pltpu.PrefetchScalarGridSpec(
                num_scalar_prefetch=1,                 # ids live in SMEM
                grid=(B,),
                in_specs=[pl.BlockSpec((pl.Element(1), Dp),
                                       lambda i, ids_ref: (ids_ref[i], 0))],
                out_specs=pl.BlockSpec((1, Dp), lambda i, ids_ref: (i, 0)),
            ),
            compiler_params=pltpu.CompilerParams(
                dimension_semantics=("arbitrary",),
                vmem_limit_bytes=int(min(max(8 * Dp * 4 + (8 << 20), 16 << 20), cap))),
        )(ids, weight_padded)
        return out

    # ---- Fast path: VMEM-resident table + one-hot gather on the MXU ----
    ids_p = jnp.zeros((Bp, 1), jnp.int32).at[:B, 0].set(ids)
    # Megacore split only pays off when per-core batch work amortizes the
    # per-core table DMA (v7x: each core loads the full table).
    parallel = (num_tiles >= 2) and (Bp >= Vp)
    sem = "parallel" if parallel else "arbitrary"

    out = pl.pallas_call(
        _onehot_gather_kernel,
        out_shape=jax.ShapeDtypeStruct((Bp, Dp), weight_padded.dtype),
        grid_spec=pltpu.PrefetchScalarGridSpec(
            num_scalar_prefetch=0,
            grid=(num_tiles,),
            in_specs=[
                pl.BlockSpec((TB, 1), lambda i: (i, 0)),        # ids tile
                _table_spec((1, Vp), lambda i: (0, 0)),         # iota row, resident
                _table_spec((Vp, Dp), lambda i: (0, 0)),        # table, resident
            ],
            out_specs=pl.BlockSpec((TB, Dp), lambda i: (i, 0)),
        ),
        compiler_params=pltpu.CompilerParams(
            dimension_semantics=(sem,),
            vmem_limit_bytes=int(min(max(needed, 16 << 20), cap))),
    )(ids_p, iota_row, weight_padded)
    return out[:B]


# ----------------------------------------------------------------------------
# Fused multi-table gather (dict-mode): one pallas_call over (table, batch-tile)
# ----------------------------------------------------------------------------
def embedding_gather_multi(tables_stacked: jax.Array, iota_row: jax.Array,
                           ids_list: List[jax.Array]):
    """tables_stacked: (T, Vp, Dmax); ids_list: per-table (B_t,) int32 arrays.
    Returns (T, Bp, Dmax) padded output, or None if a table block does not fit
    the VMEM budget (caller then falls back to per-table gathers)."""
    T, Vp, Dmax = map(int, tables_stacked.shape)
    B_max = max(int(v.shape[0]) for v in ids_list)
    cap = _vmem_cap_bytes()

    TB = _pick_tb(B_max)
    num_tiles = -(-B_max // TB)
    Bp = num_tiles * TB

    needed = (_table_buffer_count() * Vp * Dmax * 4
              + 2 * (TB * Dmax * 4 + TB * 4) + 2 * TB * Vp * 4 + Vp * 4 + (4 << 20))
    if needed > cap:
        return None

    ids_stacked = jnp.zeros((T, Bp, 1), jnp.int32)
    for t, v in enumerate(ids_list):
        ids_stacked = ids_stacked.at[t, :int(v.shape[0]), 0].set(v.astype(jnp.int32))

    parallel = (num_tiles >= 2) and (Bp >= Vp)
    sem = "parallel" if parallel else "arbitrary"

    out = pl.pallas_call(
        _onehot_gather_kernel_multi,
        out_shape=jax.ShapeDtypeStruct((T, Bp, Dmax), tables_stacked.dtype),
        grid_spec=pltpu.PrefetchScalarGridSpec(
            num_scalar_prefetch=0,
            grid=(T, num_tiles),
            in_specs=[
                pl.BlockSpec((1, TB, 1), lambda t, i: (t, i, 0)),      # ids tile
                _table_spec((1, Vp), lambda t, i: (0, 0)),             # iota row
                _table_spec((1, Vp, Dmax), lambda t, i: (t, 0, 0)),    # table t
            ],
            out_specs=pl.BlockSpec((1, TB, Dmax), lambda t, i: (t, i, 0)),
        ),
        compiler_params=pltpu.CompilerParams(
            dimension_semantics=("arbitrary", sem),
            vmem_limit_bytes=int(min(max(needed, 16 << 20), cap))),
    )(ids_stacked, iota_row, tables_stacked)
    return out


# ----------------------------------------------------------------------------
# Host-side renorm (torch semantics: scale by max_norm/(norm+1e-7) iff
# norm > max_norm), folded into the stored table once at init.
# ----------------------------------------------------------------------------
def _renorm_rows(w: jax.Array, max_norm: float) -> jax.Array:
    norm = jnp.sqrt(jnp.sum(w * w, axis=-1, keepdims=True))
    scale = jnp.where(norm > max_norm, max_norm / (norm + 1e-7), 1.0)
    return w * scale


# ----------------------------------------------------------------------------
# JAX-side module mirroring LatentCodeEmbeddings (forward semantics)
# ----------------------------------------------------------------------------
class LatentCodeEmbeddings:
    def __init__(self, n_embeddings: int, embedding_dims: Dict[str, int],
                 name_idx_mapping: Dict[str, int], max_norm: float = None,
                 key: jax.Array = None):
        assert len(embedding_dims) == n_embeddings
        self.n_embeddings = n_embeddings
        self.name_idx_mapping = name_idx_mapping
        self.embedding_dims = dict(embedding_dims)
        vocab = len(name_idx_mapping)
        self._vocab = vocab
        if key is None:
            key = jax.random.PRNGKey(0)
        keys = jax.random.split(key, n_embeddings)

        # torch.nn.Embedding default init: N(0, 1).  Raw weights kept for the
        # pure-JAX reference; the kernels consume renormalised copies.
        self.weights = {
            name: jax.random.normal(k, (vocab, dims), dtype=jnp.float32)
            for k, (name, dims) in zip(keys, embedding_dims.items())
        }
        # max_norm arg is ignored, set to sqrt(dim) per table (as in the module).
        self.max_norms = {name: math.sqrt(d) for name, d in embedding_dims.items()}
        renormed = {name: _renorm_rows(w, self.max_norms[name])
                    for name, w in self.weights.items()}

        # Vocab padded to a lane-dense MXU contraction dim.
        Vp = _round_up(vocab, 256) if vocab > 128 else _round_up(vocab, 128)
        self._Vp = Vp
        self._iota_row = jnp.arange(Vp, dtype=jnp.int32).reshape(1, Vp)

        self._table_order = list(embedding_dims.keys())
        self._table_idx = {name: t for t, name in enumerate(self._table_order)}

        # Per-table padded tables (Vp, round_up(D, 128)).
        self._tables = {}
        for name in self._table_order:
            w = renormed[name]
            D = int(w.shape[1])
            Dp = _round_up(D, 128)
            wp = jnp.zeros((Vp, Dp), jnp.float32).at[:vocab, :D].set(w)
            self._tables[name] = (wp, D)

        # List-mode fused table: concat along D with 128-aligned offsets
        # (post-kernel column splits are lane-aligned slices).
        parts, offsets, off = [], {}, 0
        for name in self._table_order:
            wp, D = self._tables[name]
            offsets[name] = (off, D)
            parts.append(wp)
            off += int(wp.shape[1])
        self._fused_table = jnp.concatenate(parts, axis=1)
        self._fused_offsets = offsets

        # Dict-mode stacked table (T, Vp, Dmax) for the fused multi-table kernel.
        Dmax = max(int(wp.shape[1]) for wp, _ in self._tables.values())
        stack = []
        for name in self._table_order:
            wp, _ = self._tables[name]
            if int(wp.shape[1]) < Dmax:
                wp = jnp.zeros((Vp, Dmax), jnp.float32).at[:, :wp.shape[1]].set(wp)
            stack.append(wp)
        self._stacked_tables = jnp.stack(stack, axis=0)
        self._Dmax = Dmax

    def _names_to_ids(self, names: List[str]) -> jax.Array:
        return jnp.asarray([self.name_idx_mapping[n] for n in names],
                           dtype=jnp.int32)

    def forward(self, names: Union[List[str], Dict[str, List[str]]]):
        if isinstance(names, list):
            ids = self._names_to_ids(names)
            gathered = embedding_gather(self._fused_table, self._iota_row, ids)
            return {name: gathered[:, s:s + d]
                    for name, (s, d) in self._fused_offsets.items()}
        elif isinstance(names, dict):
            order = list(names.keys())
            ids_list = [self._names_to_ids(v) for v in names.values()]
            t_idx = jnp.asarray([self._table_idx[k] for k in order], jnp.int32)
            sub_stack = self._stacked_tables[t_idx]
            out_stack = embedding_gather_multi(sub_stack, self._iota_row, ids_list)
            if out_stack is not None:
                return {k: out_stack[t, :len(names[k]), :self.embedding_dims[k]]
                        for t, k in enumerate(order)}
            # Table block too large for VMEM: per-table gather (row-DMA inside).
            out = {}
            for k, ids in zip(order, ids_list):
                wp, d = self._tables[k]
                out[k] = embedding_gather(wp, self._iota_row, ids)[:, :d]
            return out
        else:
            raise TypeError(
                f'names can only be a list or dict, but given {type(names)}.')

    __call__ = forward


# ----------------------------------------------------------------------------
# Reference (pure JAX, torch lookup semantics) for verification
# ----------------------------------------------------------------------------
def _reference_lookup(weight, ids, max_norm):
    rows = weight[ids]
    norm = jnp.sqrt(jnp.sum(rows * rows, axis=-1, keepdims=True))
    scale = jnp.where(norm > max_norm, max_norm / (norm + 1e-7), 1.0)
    return rows * scale


if __name__ == "__main__":
    # Small deterministic setup
    name_idx_mapping = {f"obj_{i}": i for i in range(8)}   # vocab = 8
    embedding_dims = {"shape": 32, "texture": 64}
    module = LatentCodeEmbeddings(
        n_embeddings=2,
        embedding_dims=embedding_dims,
        name_idx_mapping=name_idx_mapping,
        max_norm=None,
        key=jax.random.PRNGKey(0),
    )

    ok = True

    # list-style input (batch of 4 names) -> one fused-table kernel call
    names_list = ["obj_3", "obj_0", "obj_7", "obj_3"]
    out_list = module(names_list)
    jax.block_until_ready(out_list)
    ids_list = module._names_to_ids(names_list)
    for k, w in module.weights.items():
        ref = _reference_lookup(w, ids_list, module.max_norms[k])
        ok &= bool(jnp.allclose(out_list[k], ref, atol=1e-5, rtol=1e-5))
        ok &= out_list[k].shape == (len(names_list), embedding_dims[k])

    # dict-style input -> one fused multi-table kernel call
    names_dict = {"shape": ["obj_1", "obj_5"],
                  "texture": ["obj_2", "obj_6", "obj_4"]}
    out_dict = module(names_dict)
    jax.block_until_ready(out_dict)
    for k, v in names_dict.items():
        ids = module._names_to_ids(v)
        ref = _reference_lookup(module.weights[k], ids, module.max_norms[k])
        ok &= bool(jnp.allclose(out_dict[k], ref, atol=1e-5, rtol=1e-5))
        ok &= out_dict[k].shape == (len(v), embedding_dims[k])

    # large-table fallback path (row-DMA gather), forced at small shapes
    wp, d = module._tables["shape"]
    out_rd = embedding_gather(wp, module._iota_row, ids_list,
                              force_rowdma=True)[:, :d]
    jax.block_until_ready(out_rd)
    ref_rd = _reference_lookup(module.weights["shape"], ids_list,
                               module.max_norms["shape"])
    ok &= bool(jnp.allclose(out_rd, ref_rd, atol=1e-5, rtol=1e-5))

    assert ok, "Pallas embedding lookup mismatch vs reference"
    print("KERNEL_OK")
</pallas_src>

<mosaic_0001>
module attributes {stable_mosaic.version = 11 : i64} {
  func.func @_copy(%arg0: i32, %arg1: memref<8x128xf32, #tpu.memory_space<vmem>>, %arg2: memref<8x128xf32, #tpu.memory_space<vmem>>) attributes {dimension_semantics = [#tpu.dimension_semantics<arbitrary>], iteration_bounds = array<i64: 1>, scalar_prefetch = 0 : i64, scratch_operands = 0 : i64, tpu.core_type = #tpu.core_type<tc>, window_params = [{pipeline_mode = #tpu.pipeline_mode<synchronous>, transform_indices = @transform_0, window_bounds = array<i64: 8, 128>}, {pipeline_mode = #tpu.pipeline_mode<synchronous>, transform_indices = @transform_1, window_bounds = array<i64: 8, 128>}]} {
    %c0 = arith.constant 0 : index
    %c0_0 = arith.constant 0 : index
    %0 = vector.load %arg1[%c0, %c0_0] : memref<8x128xf32, #tpu.memory_space<vmem>>, vector<8x128xf32>
    %c0_1 = arith.constant 0 : index
    %c0_2 = arith.constant 0 : index
    %1 = vector.load %arg2[%c0_1, %c0_2] : memref<8x128xf32, #tpu.memory_space<vmem>>, vector<8x128xf32>
    tpu.vector_store %arg2[%c0_1, %c0_2], %0 {strides = array<i32>} : memref<8x128xf32, #tpu.memory_space<vmem>>, vector<8x128xf32>,
    return
  }
  func.func @transform_0(%arg0: i32) -> (i32, i32) {
    %c0_i32 = arith.constant 0 : i32
    %c0_i32_0 = arith.constant 0 : i32
    %c0_i32_1 = arith.constant 0 : i32
    return %c0_i32, %c0_i32_0 : i32, i32
  }
  func.func @transform_1(%arg0: i32) -> (i32, i32) {
    %c0_i32 = arith.constant 0 : i32
    %c0_i32_0 = arith.constant 0 : i32
    %c0_i32_1 = arith.constant 0 : i32
    return %c0_i32, %c0_i32_0 : i32, i32
  }
}

module attributes {stable_mosaic.version = 11 : i64} {
  func.func @_onehot_gather_kernel(%arg0: i32, %arg1: memref<8x1xi32, #tpu.memory_space<vmem>>, %arg2: memref<1x128xi32, #tpu.memory_space<vmem>>, %arg3: memref<128x256xf32, #tpu.memory_space<vmem>>, %arg4: memref<8x256xf32, #tpu.memory_space<vmem>>) attributes {dimension_semantics = [#tpu.dimension_semantics<arbitrary>], iteration_bounds = array<i64: 1>, scalar_prefetch = 0 : i64, scratch_operands = 0 : i64, tpu.core_type = #tpu.core_type<tc>, window_params = [{transform_indices = @transform_0, window_bounds = array<i64: 8, 1>}, {pipeline_mode = #tpu.pipeline_mode<synchronous>, transform_indices = @transform_1, window_bounds = array<i64: 1, 128>}, {pipeline_mode = #tpu.pipeline_mode<synchronous>, transform_indices = @transform_2, window_bounds = array<i64: 128, 256>}, {transform_indices = @transform_3, window_bounds = array<i64: 8, 256>}]} {
    %c0 = arith.constant 0 : index
    %c0_0 = arith.constant 0 : index
    %0 = vector.load %arg2[%c0, %c0_0] : memref<1x128xi32, #tpu.memory_space<vmem>>, vector<1x128xi32>
    %c0_1 = arith.constant 0 : index
    %c0_2 = arith.constant 0 : index
    %1 = vector.load %arg1[%c0_1, %c0_2] : memref<8x1xi32, #tpu.memory_space<vmem>>, vector<8x1xi32>
    %2 = vector.broadcast %0 : vector<1x128xi32> to vector<8x128xi32>
    %3 = vector.broadcast %1 : vector<8x1xi32> to vector<8x128xi32>
    %4 = arith.cmpi eq, %2, %3 : vector<8x128xi32>
    %5 = arith.extui %4 : vector<8x128xi1> to vector<8x128xi32>
    %6 = arith.sitofp %5 : vector<8x128xi32> to vector<8x128xf32>
    %c0_3 = arith.constant 0 : index
    %c0_4 = arith.constant 0 : index
    %7 = vector.load %arg3[%c0_3, %c0_4] : memref<128x256xf32, #tpu.memory_space<vmem>>, vector<128x256xf32>
    %cst = arith.constant dense<0.000000e+00> : vector<8x256xf32>
    %8 = tpu.matmul %6, %7, %cst {dimension_numbers = #tpu.dot_dimension_numbers<[1], [0], [0], [1], [0, 0, 1, 1], [], []>} : vector<8x128xf32>, vector<128x256xf32>, vector<8x256xf32> -> vector<8x256xf32>
    %c0_5 = arith.constant 0 : index
    %c0_6 = arith.constant 0 : index
    %9 = vector.load %arg4[%c0_5, %c0_6] : memref<8x256xf32, #tpu.memory_space<vmem>>, vector<8x256xf32>
    tpu.vector_store %arg4[%c0_5, %c0_6], %8 {strides = array<i32>} : memref<8x256xf32, #tpu.memory_space<vmem>>, vector<8x256xf32>,
    return
  }
  func.func @transform_0(%arg0: i32) -> (i32, i32) {
    %c0_i32 = arith.constant 0 : i32
    %c0_i32_0 = arith.constant 0 : i32
    return %arg0, %c0_i32 : i32, i32
  }
  func.func @transform_1(%arg0: i32) -> (i32, i32) {
    %c0_i32 = arith.constant 0 : i32
    %c0_i32_0 = arith.constant 0 : i32
    %c0_i32_1 = arith.constant 0 : i32
    return %c0_i32, %c0_i32_0 : i32, i32
  }
  func.func @transform_2(%arg0: i32) -> (i32, i32) {
    %c0_i32 = arith.constant 0 : i32
    %c0_i32_0 = arith.constant 0 : i32
    %c0_i32_1 = arith.constant 0 : i32
    return %c0_i32, %c0_i32_0 : i32, i32
  }
  func.func @transform_3(%arg0: i32) -> (i32, i32) {
    %c0_i32 = arith.constant 0 : i32
    %c0_i32_0 = arith.constant 0 : i32
    return %arg0, %c0_i32 : i32, i32
  }
}

</mosaic_0001>

<llo_original>
// kernel: tpu_custom_call.1
$region0: #{tpu_custom_call.1}
  #allocation0 [shape = 'u32[]', space=smem, size = 0x4, offset = 0x4, fixed_abs, tag = 'smem constant byte address 0x4 - core index']
  #allocation1 [shape = 'u32[144,128]{1,0:T(1,128)}', space=vmem, size = 0x12000, scoped, tag = 'internal scratch']
  %s0 = inlined_call_operand.hbm [shape: f32[8,128], index: 0, kind: input, shape index: {}]
  %s1 = inlined_call_operand.hbm [shape: f32[8,128], index: 1, kind: output, shape index: {}]
  %s2 = sld [smem:[#allocation0]]
  $region18: #{tpu_custom_call.1} parent=0
    _
  %s4 = ssub.s32 1, %s2
  %s5 = scalar_select 0, %s4, %s2
  $region1: #{tpu_custom_call.1} parent=0
    #allocation2 [shape = 'u8[4096]{0}', space=vmem, size = 0x1000, scoped, tag = 'input window, operand 0, single buffered']
    #allocation3 [shape = 's32[1]{0}', space=sflag, size = 0x4, scoped, tag = 'scoped memory for tpu_custom_call.1']
    #allocation4 [shape = 's32[1]{0}', space=sflag, size = 0x4, scoped, tag = 'scoped memory for tpu_custom_call.1']
    #allocation5 [shape = 'u8[4096]{0}', space=vmem, size = 0x1000, scoped, tag = 'output window, operand 0, single buffered']
    %6 = vsyncpa [#allocation3], 0
    %7 = vsyncpa [#allocation4], 0
    // Predicated region
    $region2: #{tpu_custom_call.1} parent=1 // pred_check
      _
    $region3: #{tpu_custom_call.1} parent=1 // pred_check_branch
      %9 = sbr.rel (0) target = $region5
    $region4: #{tpu_custom_call.1} parent=1 // pred_region
      %s11 = ssub.s32 128, 128
      %12 = vsyncadd [#allocation3], %s11
      %s14 = sshll.u32 [#allocation2], 4
      %s15 = int_to_ptr.vmem [resolvable:$true] %s14
      %17 = dma.hbm_to_vmem [thread:$0]  %s0, 128, %s15, [#allocation3]
    $region5: #{tpu_custom_call.1} parent=1 // pred_fallthru
      _
    // Predicated region
    $region6: #{tpu_custom_call.1} parent=1 // pred_check
      _
    $region7: #{tpu_custom_call.1} parent=1 // pred_check_branch
      %19 = sbr.rel (0) target = $region9
    $region8: #{tpu_custom_call.1} parent=1 // pred_region
      %20 = dma.done [#allocation3], 128
    $region9: #{tpu_custom_call.1} parent=1 // pred_fallthru
      _
    %v21 = vld [vmem:[#allocation2] sm:$0xff]
    %22 = vst [vmem:[#allocation5] sm:$0xff] %v21
    // Predicated region
    $region10: #{tpu_custom_call.1} parent=1 // pred_check
      _
    $region11: #{tpu_custom_call.1} parent=1 // pred_check_branch
      %24 = sbr.rel (0) target = $region13
    $region12: #{tpu_custom_call.1} parent=1 // pred_region
      %s26 = ssub.s32 128, 128
      %27 = vsyncadd [#allocation4], %s26
      %s29 = sshll.u32 [#allocation5], 4
      %s30 = int_to_ptr.vmem [resolvable:$true] %s29
      %32 = dma.vmem_to_hbm [thread:$0]  %s30, 128, %s1, [#allocation4]
    $region13: #{tpu_custom_call.1} parent=1 // pred_fallthru
      _
    // Predicated region
    $region14: #{tpu_custom_call.1} parent=1 // pred_check
      _
    $region15: #{tpu_custom_call.1} parent=1 // pred_check_branch
      %34 = sbr.rel (0) target = $region17
    $region16: #{tpu_custom_call.1} parent=1 // pred_region
      %35 = dma.done [#allocation4], 128
    $region17: #{tpu_custom_call.1} parent=1 // pred_fallthru
      _
    %36 = vsyncpa [#allocation3], 1
    %37 = vsyncpa [#allocation4], 1

// kernel: tpu_custom_call.1
$region0: #{tpu_custom_call.1}
  #allocation0 [shape = 'u32[]', space=smem, size = 0x4, offset = 0x4, fixed_abs, tag = 'smem constant byte address 0x4 - core index']
  #allocation1 [shape = 'u32[144,128]{1,0:T(1,128)}', space=vmem, size = 0x12000, scoped, tag = 'internal scratch']
  %s0 = inlined_call_operand.vmem [shape: s32[8,1], index: 0, kind: input, shape index: {}]
  %s1 = inlined_call_operand.vmem [shape: s32[1,128], index: 1, kind: input, shape index: {}]
  %s2 = inlined_call_operand.hbm [shape: f32[128,256], index: 2, kind: input, shape index: {}]
  %s3 = inlined_call_operand.hbm [shape: f32[8,256], index: 3, kind: output, shape index: {}]
  %s4 = sld [smem:[#allocation0]]
  $region26: #{tpu_custom_call.1} parent=0
    _
  %s6 = ssub.s32 1, %s4
  %s7 = scalar_select 0, %s6, %s4
  $region1: #{tpu_custom_call.1} parent=0
    #allocation2 [shape = 'u8[131072]{0}', space=vmem, size = 0x20000, scoped, tag = 'input window, operand 2, single buffered']
    #allocation3 [shape = 's32[1]{0}', space=sflag, size = 0x4, scoped, tag = 'scoped memory for tpu_custom_call.1']
    #allocation4 [shape = 's32[1]{0}', space=sflag, size = 0x4, scoped, tag = 'scoped memory for tpu_custom_call.1']
    #allocation5 [shape = 'u8[8192]{0}', space=vmem, size = 0x2000, scoped, tag = 'output window, operand 0, single buffered']
    %8 = vsyncpa [#allocation3], 0
    %9 = vsyncpa [#allocation4], 0
    // Predicated region
    $region2: #{tpu_custom_call.1} parent=1 // pred_check
      _
    $region3: #{tpu_custom_call.1} parent=1 // pred_check_branch
      %11 = sbr.rel (0) target = $region5
    $region4: #{tpu_custom_call.1} parent=1 // pred_region
      _
    $region5: #{tpu_custom_call.1} parent=1 // pred_fallthru
      _
    // Predicated region
    $region6: #{tpu_custom_call.1} parent=1 // pred_check
      _
    $region7: #{tpu_custom_call.1} parent=1 // pred_check_branch
      %13 = sbr.rel (0) target = $region9
    $region8: #{tpu_custom_call.1} parent=1 // pred_region
      _
    $region9: #{tpu_custom_call.1} parent=1 // pred_fallthru
      _
    // Predicated region
    $region10: #{tpu_custom_call.1} parent=1 // pred_check
      _
    $region11: #{tpu_custom_call.1} parent=1 // pred_check_branch
      %15 = sbr.rel (0) target = $region13
    $region12: #{tpu_custom_call.1} parent=1 // pred_region
      %s17 = ssub.s32 4096, 4096
      %18 = vsyncadd [#allocation3], %s17
      %s19 = sshll.u32 [#allocation2], 4
      %s20 = int_to_ptr.vmem [resolvable:$true] %s19
      %25 = dma.hbm_to_vmem [thread:$0]  %s2, 4096, %s20, [#allocation3], 256, 256, 16
    $region13: #{tpu_custom_call.1} parent=1 // pred_fallthru
      _
    // Predicated region
    $region14: #{tpu_custom_call.1} parent=1 // pred_check
      _
    $region15: #{tpu_custom_call.1} parent=1 // pred_check_branch
      %27 = sbr.rel (0) target = $region17
    $region16: #{tpu_custom_call.1} parent=1 // pred_region
      %28 = dma.done [#allocation3], 4096
    $region17: #{tpu_custom_call.1} parent=1 // pred_fallthru
      _
    %v29 = vld [vmem:[%s1] sm:$0x1]
    %v30 = vld [vmem:[%s0] sm:$0xff]
    %v31 = vlaneseq
    %v32 = vshrl.u32 %v31, 7
    %v33 = vsub.s32 0, %v32
    %v34 = vrot.slane %v29, %v33
    %35 = vset.pattern.permute.xlu0 0
    %36 = vperm.xlu0 %35, %v30
    %v37 = vpop.permute.xlu0 %36
    %vm38 = vcmp.eq.s32.totalorder %v34, %v37
    %v39 = vsel %vm38, 1, 0
    %v40 = vcvt.s32.f32 %v39
    %v41 = vld [vmem:[#allocation2] sm:$0xff]
    %v42 = vld [vmem:[#allocation2 + $0x8] sm:$0xff]
    %v43 = vld [vmem:[#allocation2 + $0x10] sm:$0xff]
    %v44 = vld [vmem:[#allocation2 + $0x18] sm:$0xff]
    %v45 = vld [vmem:[#allocation2 + $0x20] sm:$0xff]
    %v46 = vld [vmem:[#allocation2 + $0x28] sm:$0xff]
    %v47 = vld [vmem:[#allocation2 + $0x30] sm:$0xff]
    %v48 = vld [vmem:[#allocation2 + $0x38] sm:$0xff]
    %v49 = vld [vmem:[#allocation2 + $0x40] sm:$0xff]
    %v50 = vld [vmem:[#allocation2 + $0x48] sm:$0xff]
    %v51 = vld [vmem:[#allocation2 + $0x50] sm:$0xff]
    %v52 = vld [vmem:[#allocation2 + $0x58] sm:$0xff]
    %v53 = vld [vmem:[#allocation2 + $0x60] sm:$0xff]
    %v54 = vld [vmem:[#allocation2 + $0x68] sm:$0xff]
    %v55 = vld [vmem:[#allocation2 + $0x70] sm:$0xff]
    %v56 = vld [vmem:[#allocation2 + $0x78] sm:$0xff]
    %v57 = vld [vmem:[#allocation2 + $0x80] sm:$0xff]
    %v58 = vld [vmem:[#allocation2 + $0x88] sm:$0xff]
    %v59 = vld [vmem:[#allocation2 + $0x90] sm:$0xff]
    %v60 = vld [vmem:[#allocation2 + $0x98] sm:$0xff]
    %v61 = vld [vmem:[#allocation2 + $0xa0] sm:$0xff]
    %v62 = vld [vmem:[#allocation2 + $0xa8] sm:$0xff]
    %v63 = vld [vmem:[#allocation2 + $0xb0] sm:$0xff]
    %v64 = vld [vmem:[#allocation2 + $0xb8] sm:$0xff]
    %v65 = vld [vmem:[#allocation2 + $0xc0] sm:$0xff]
    %v66 = vld [vmem:[#allocation2 + $0xc8] sm:$0xff]
    %v67 = vld [vmem:[#allocation2 + $0xd0] sm:$0xff]
    %v68 = vld [vmem:[#allocation2 + $0xd8] sm:$0xff]
    %v69 = vld [vmem:[#allocation2 + $0xe0] sm:$0xff]
    %v70 = vld [vmem:[#allocation2 + $0xe8] sm:$0xff]
    %v71 = vld [vmem:[#allocation2 + $0xf0] sm:$0xff]
    %v72 = vld [vmem:[#allocation2 + $0xf8] sm:$0xff]
    %73 = vmatprep.subr.mxu0 %v42
    %74 = vmatpush1.msra.mxu0 %v41
    %75 = vmatprep.subr.mxu0 %v44
    %76 = vmatpush1.msra.mxu0 %v43
    %77 = vmatprep.subr.mxu0 %v46
    %78 = vmatpush1.msra.mxu0 %v45
    %79 = vmatprep.subr.mxu0 %v48
    %80 = vmatpush1.msra.mxu0 %v47
    %81 = vmatprep.subr.mxu0 %v50
    %82 = vmatpush1.msra.mxu0 %v49
    %83 = vmatprep.subr.mxu0 %v52
    %84 = vmatpush1.msra.mxu0 %v51
    %85 = vmatprep.subr.mxu0 %v54
    %86 = vmatpush1.msra.mxu0 %v53
    %87 = vmatprep.subr.mxu0 %v56
    %88 = vmatpush1.msra.mxu0 %v55
    %89 = vmatprep.subr.mxu0 %v58
    %90 = vmatpush1.msra.mxu0 %v57
    %91 = vmatprep.subr.mxu0 %v60
    %92 = vmatpush1.msra.mxu0 %v59
    %93 = vmatprep.subr.mxu0 %v62
    %94 = vmatpush1.msra.mxu0 %v61
    %95 = vmatprep.subr.mxu0 %v64
    %96 = vmatpush1.msra.mxu0 %v63
    %97 = vmatprep.subr.mxu0 %v66
    %98 = vmatpush1.msra.mxu0 %v65
    %99 = vmatprep.subr.mxu0 %v68
    %100 = vmatpush1.msra.mxu0 %v67
    %101 = vmatprep.subr.mxu0 %v70
    %102 = vmatpush1.msra.mxu0 %v69
    %103 = vmatprep.subr.mxu0 %v72
    %104 = vmatpush1.msra.mxu0 %v71
    %105 = vmatprep.subr.mxu0 0.0
    %106 = vmatpush1.msra.mxu0 0.0
    %107 = vmatprep.subr.mxu0 0.0
    %108 = vmatpush1.msra.mxu0 0.0
    %109 = vmatprep.subr.mxu0 0.0
    %110 = vmatpush1.msra.mxu0 0.0
    %111 = vmatprep.subr.mxu0 0.0
    %112 = vmatpush1.msra.mxu0 0.0
    %113 = vmatprep.subr.mxu0 0.0
    %114 = vmatpush1.msra.mxu0 0.0
    %115 = vmatprep.subr.mxu0 0.0
    %116 = vmatpush1.msra.mxu0 0.0
    %117 = vmatprep.subr.mxu0 0.0
    %118 = vmatpush1.msra.mxu0 0.0
    %119 = vmatprep.subr.mxu0 0.0
    %120 = vmatpush1.msra.mxu0 0.0
    %121 = vmatprep.subr.mxu0 0.0
    %122 = vmatpush1.msra.mxu0 0.0
    %123 = vmatprep.subr.mxu0 0.0
    %124 = vmatpush1.msra.mxu0 0.0
    %125 = vmatprep.subr.mxu0 0.0
    %126 = vmatpush1.msra.mxu0 0.0
    %127 = vmatprep.subr.mxu0 0.0
    %128 = vmatpush1.msra.mxu0 0.0
    %129 = vmatprep.subr.mxu0 0.0
    %130 = vmatpush1.msra.mxu0 0.0
    %131 = vmatprep.subr.mxu0 0.0
    %132 = vmatpush1.msra.mxu0 0.0
    %133 = vmatprep.subr.mxu0 0.0
    %134 = vmatpush1.msra.mxu0 0.0
    %135 = vmatprep.subr.mxu0 0.0
    %136 = vmatpush1.msra.mxu0 0.0
    %137 = vmatprep.mubr.f32.mxu0 0.0
    %138 = vmatmul.mubr.f32.gmra.mrb[0].mxu0 %v40
    %v139 = vpop.f32.mrb[0].mxu0
    %v140 = vadd.f32 0.0, %v139
    %v141 = vpop.f32.mrb[0].mxu0
    %v142 = vadd.f32 0.0, %v141
    %143 = vdwg.mxu0
    %144 = vst [vmem:[#allocation5] sm:$0xff] %v140
    %145 = vst [vmem:[#allocation5 + $0x8] sm:$0xff] %v142
    // Predicated region
    $region18: #{tpu_custom_call.1} parent=1 // pred_check
      _
    $region19: #{tpu_custom_call.1} parent=1 // pred_check_branch
      %147 = sbr.rel (0) target = $region21
    $region20: #{tpu_custom_call.1} parent=1 // pred_region
      %s149 = ssub.s32 256, 256
      %150 = vsyncadd [#allocation4], %s149
      %s152 = sshll.u32 [#allocation5], 4
      %s153 = int_to_ptr.vmem [resolvable:$true] %s152
      %155 = dma.vmem_to_hbm [thread:$0]  %s153, 256, %s3, [#allocation4]
    $region21: #{tpu_custom_call.1} parent=1 // pred_fallthru
      _
    // Predicated region
    $region22: #{tpu_custom_call.1} parent=1 // pred_check
      _
    $region23: #{tpu_custom_call.1} parent=1 // pred_check_branch
      %157 = sbr.rel (0) target = $region25
    $region24: #{tpu_custom_call.1} parent=1 // pred_region
      %158 = dma.done [#allocation4], 256
    $region25: #{tpu_custom_call.1} parent=1 // pred_fallthru
      _
    %159 = vsyncpa [#allocation3], 1
    %160 = vsyncpa [#allocation4], 1

</llo_original>
